<compile_context>
chip_gen: v5e
topology: v5e:2x2
jax: 0.10.0
libtpu: 0.0.40
codegen_flags: <defaults>
</compile_context>

<pallas_src>
import functools
import math

import jax
import jax.numpy as jnp
from jax.experimental import pallas as pl
from jax.experimental.pallas import tpu as pltpu


def _arcmargin_kernel(x_ref, w_ref, label_ref, o_ref, *,
                      s, cos_m, sin_m, th, mm, easy_margin, matmul_dtype):
    x = x_ref[...].astype(jnp.float32)          # (TILE_B, D_pad)
    w = w_ref[...].astype(jnp.float32)          # (TILE_C, D_pad)

    # F.normalize(v, p=2, dim=1, eps=1e-12)  ==  v * rsqrt(max(sum(v^2), eps^2))
    eps = 1e-12
    x_norm = x * jax.lax.rsqrt(
        jnp.maximum(jnp.sum(x * x, axis=1, keepdims=True), eps * eps))
    w_norm = w * jax.lax.rsqrt(
        jnp.maximum(jnp.sum(w * w, axis=1, keepdims=True), eps * eps))

    # cosine = x_norm @ w_norm.T, expressed without a transpose:
    # contract dim 1 of both operands.  bf16 operands, f32 accumulation (MXU).
    cosine = jax.lax.dot_general(
        x_norm.astype(matmul_dtype), w_norm.astype(matmul_dtype),
        dimension_numbers=(((1,), (1,)), ((), ())),
        preferred_element_type=jnp.float32)      # (TILE_B, TILE_C)

    # sine = sqrt(clamp(1 - cosine^2, 1e-9, 1))   (matches the module)
    sine = jnp.sqrt(jnp.clip(1.0 - cosine * cosine, 1e-9, 1.0))
    phi = cosine * cos_m - sine * sin_m
    if easy_margin:
        phi = jnp.where(cosine > 0.0, phi, cosine)
    else:
        phi = jnp.where(cosine > th, phi, cosine - mm)

    # one-hot scatter as a select; class ids offset by this C-tile's origin.
    label = label_ref[...]                                            # (TILE_B, 1)
    col0 = pl.program_id(1) * o_ref.shape[1]
    class_ids = jax.lax.broadcasted_iota(jnp.int32, cosine.shape, 1) + col0
    out = jnp.where(class_ids == label, phi, cosine) * s
    o_ref[...] = out.astype(o_ref.dtype)


def _round_up(v, m):
    return (v + m - 1) // m * m


def arc_margin_product(x, weight, label, *, s=30.0, m=0.5, easy_margin=False,
                       tile_b=256, tile_c=512, matmul_dtype=jnp.bfloat16):
    """x: (B, D) f32, weight: (C, D) f32, label: (B,) int -> (B, C) f32."""
    B, D = x.shape
    C, D2 = weight.shape
    assert D == D2, "feature dims must match"

    cos_m = math.cos(m)
    sin_m = math.sin(m)
    th = math.cos(math.pi - m)
    mm = math.sin(math.pi - m) * m

    # --- tile plan (lane-dense, v7x-safe defaults) -------------------------
    D_pad = _round_up(D, 128)
    tb = _round_up(min(tile_b, _round_up(B, 8)), 8)
    tc = _round_up(min(tile_c, _round_up(C, 128)), 128)
    B_pad = _round_up(B, tb)
    C_pad = _round_up(C, tc)

    # Zero padding: zero rows/cols do not perturb norms or dot products and
    # are sliced off below.  Padded labels are -1 so they never match a class.
    x_p = jnp.pad(x.astype(jnp.float32), ((0, B_pad - B), (0, D_pad - D)))
    w_p = jnp.pad(weight.astype(jnp.float32), ((0, C_pad - C), (0, D_pad - D)))
    label2d = jnp.pad(label.reshape(B, 1).astype(jnp.int32),
                      ((0, B_pad - B), (0, 0)), constant_values=-1)

    kernel = functools.partial(
        _arcmargin_kernel,
        s=float(s), cos_m=cos_m, sin_m=sin_m, th=th, mm=mm,
        easy_margin=bool(easy_margin), matmul_dtype=matmul_dtype,
    )

    grid = (B_pad // tb, C_pad // tc)

    out_p = pl.pallas_call(
        kernel,
        out_shape=jax.ShapeDtypeStruct((B_pad, C_pad), jnp.float32),
        grid=grid,
        in_specs=[
            pl.BlockSpec((tb, D_pad), lambda i, j: (i, 0)),   # x tile
            pl.BlockSpec((tc, D_pad), lambda i, j: (j, 0)),   # weight tile
            pl.BlockSpec((tb, 1), lambda i, j: (i, 0)),       # label tile
        ],
        out_specs=pl.BlockSpec((tb, tc), lambda i, j: (i, j)),
        compiler_params=pltpu.CompilerParams(
            dimension_semantics=("parallel", "parallel"),
            # Explicit budget with headroom under v7x's 64 MiB physical VMEM.
            vmem_limit_bytes=48 * 1024 * 1024,
        ),
    )(x_p, w_p, label2d)

    return out_p[:B, :C]


if __name__ == "__main__":
    # Small shapes; tiles chosen so the grid has >1 tile on both axes and
    # padding paths are exercised (D: 32 -> 128, C: 200 -> 256).
    batch = 16
    in_features = 32
    out_features = 200

    key = jax.random.PRNGKey(0)
    kx, kw, kl = jax.random.split(key, 3)

    x = jax.random.normal(kx, (batch, in_features), dtype=jnp.float32)

    # Deterministic xavier_uniform_ init for weight (out_features, in_features)
    bound = math.sqrt(6.0 / (in_features + out_features))
    weight = jax.random.uniform(
        kw, (out_features, in_features), dtype=jnp.float32,
        minval=-bound, maxval=bound)

    label = jax.random.randint(kl, (batch,), 0, out_features, dtype=jnp.int32)

    out = arc_margin_product(x, weight, label, s=30.0, m=0.5, easy_margin=False,
                             tile_b=8, tile_c=128)
    jax.block_until_ready(out)
    assert out.shape == (batch, out_features)

    # Pure-JAX reference mirroring the kernel math (bf16 matmul operands,
    # f32 accumulation) for a tight-tolerance correctness check.
    xn = x * jax.lax.rsqrt(
        jnp.maximum(jnp.sum(x * x, axis=1, keepdims=True), 1e-24))
    wn = weight * jax.lax.rsqrt(
        jnp.maximum(jnp.sum(weight * weight, axis=1, keepdims=True), 1e-24))
    cosine = jax.lax.dot_general(
        xn.astype(jnp.bfloat16), wn.astype(jnp.bfloat16),
        dimension_numbers=(((1,), (1,)), ((), ())),
        preferred_element_type=jnp.float32)
    sine = jnp.sqrt(jnp.clip(1.0 - cosine ** 2, 1e-9, 1.0))
    phi = cosine * math.cos(0.5) - sine * math.sin(0.5)
    phi = jnp.where(cosine > math.cos(math.pi - 0.5), phi,
                    cosine - math.sin(math.pi - 0.5) * 0.5)
    one_hot = jax.nn.one_hot(label, out_features, dtype=jnp.float32)
    ref = (one_hot * phi + (1.0 - one_hot) * cosine) * 30.0

    assert jnp.allclose(out, ref, atol=5e-3, rtol=1e-3), (
        f"max err {jnp.max(jnp.abs(out - ref))}")
    print("KERNEL_OK")
</pallas_src>

<mosaic_0001>
module attributes {stable_mosaic.version = 11 : i64} {
  func.func @_arcmargin_kernel(%arg0: i32, %arg1: i32, %arg2: memref<8x128xf32, #tpu.memory_space<vmem>>, %arg3: memref<128x128xf32, #tpu.memory_space<vmem>>, %arg4: memref<8x1xi32, #tpu.memory_space<vmem>>, %arg5: memref<8x128xf32, #tpu.memory_space<vmem>>) attributes {dimension_semantics = [#tpu.dimension_semantics<parallel>, #tpu.dimension_semantics<parallel>], iteration_bounds = array<i64: 2, 2>, scalar_prefetch = 0 : i64, scratch_operands = 0 : i64, tpu.core_type = #tpu.core_type<tc>, window_params = [{transform_indices = @transform_0, window_bounds = array<i64: 8, 128>}, {transform_indices = @transform_1, window_bounds = array<i64: 128, 128>}, {transform_indices = @transform_2, window_bounds = array<i64: 8, 1>}, {transform_indices = @transform_3, window_bounds = array<i64: 8, 128>}]} {
    %c0 = arith.constant 0 : index
    %c0_0 = arith.constant 0 : index
    %0 = vector.load %arg2[%c0, %c0_0] : memref<8x128xf32, #tpu.memory_space<vmem>>, vector<8x128xf32>
    %c0_1 = arith.constant 0 : index
    %c0_2 = arith.constant 0 : index
    %1 = vector.load %arg3[%c0_1, %c0_2] : memref<128x128xf32, #tpu.memory_space<vmem>>, vector<128x128xf32>
    %2 = arith.mulf %0, %0 : vector<8x128xf32>
    %cst = arith.constant dense<0.000000e+00> : vector<8xf32>
    %3 = vector.multi_reduction <add>, %2, %cst [1] : vector<8x128xf32> to vector<8xf32>
    %4 = vector.shape_cast %3 : vector<8xf32> to vector<8x1xf32>
    %cst_3 = arith.constant 1.000000e-24 : f32
    %5 = vector.broadcast %cst_3 : f32 to vector<8x1xf32>
    %6 = arith.maximumf %4, %5 : vector<8x1xf32>
    %7 = math.rsqrt %6 : vector<8x1xf32>
    %8 = vector.broadcast %7 : vector<8x1xf32> to vector<8x128xf32>
    %9 = arith.mulf %0, %8 : vector<8x128xf32>
    %10 = arith.mulf %1, %1 : vector<128x128xf32>
    %cst_4 = arith.constant dense<0.000000e+00> : vector<128xf32>
    %11 = vector.multi_reduction <add>, %10, %cst_4 [1] : vector<128x128xf32> to vector<128xf32>
    %12 = vector.shape_cast %11 : vector<128xf32> to vector<128x1xf32>
    %cst_5 = arith.constant 1.000000e-24 : f32
    %13 = vector.broadcast %cst_5 : f32 to vector<128x1xf32>
    %14 = arith.maximumf %12, %13 : vector<128x1xf32>
    %15 = math.rsqrt %14 : vector<128x1xf32>
    %16 = vector.broadcast %15 : vector<128x1xf32> to vector<128x128xf32>
    %17 = arith.mulf %1, %16 : vector<128x128xf32>
    %18 = arith.truncf %9 : vector<8x128xf32> to vector<8x128xbf16>
    %19 = arith.truncf %17 : vector<128x128xf32> to vector<128x128xbf16>
    %cst_6 = arith.constant dense<0.000000e+00> : vector<8x128xf32>
    %20 = tpu.matmul %18, %19, %cst_6 {dimension_numbers = #tpu.dot_dimension_numbers<[1], [1], [0], [0], [0, 0, 1, 0], [], []>} : vector<8x128xbf16>, vector<128x128xbf16>, vector<8x128xf32> -> vector<8x128xf32>
    %21 = arith.mulf %20, %20 : vector<8x128xf32>
    %cst_7 = arith.constant 1.000000e+00 : f32
    %22 = vector.broadcast %cst_7 : f32 to vector<8x128xf32>
    %23 = arith.subf %22, %21 : vector<8x128xf32>
    %cst_8 = arith.constant 9.99999971E-10 : f32
    %cst_9 = arith.constant 1.000000e+00 : f32
    %24 = vector.broadcast %cst_8 : f32 to vector<8x128xf32>
    %25 = arith.maximumf %24, %23 : vector<8x128xf32>
    %26 = vector.broadcast %cst_9 : f32 to vector<8x128xf32>
    %27 = arith.minimumf %26, %25 : vector<8x128xf32>
    %28 = math.sqrt %27 : vector<8x128xf32>
    %cst_10 = arith.constant 0.87758255 : f32
    %29 = vector.broadcast %cst_10 : f32 to vector<8x128xf32>
    %30 = arith.mulf %20, %29 : vector<8x128xf32>
    %cst_11 = arith.constant 0.47942555 : f32
    %31 = vector.broadcast %cst_11 : f32 to vector<8x128xf32>
    %32 = arith.mulf %28, %31 : vector<8x128xf32>
    %33 = arith.subf %30, %32 : vector<8x128xf32>
    %cst_12 = arith.constant -0.87758255 : f32
    %34 = vector.broadcast %cst_12 : f32 to vector<8x128xf32>
    %35 = arith.cmpf ogt, %20, %34 : vector<8x128xf32>
    %cst_13 = arith.constant 0.239712775 : f32
    %36 = vector.broadcast %cst_13 : f32 to vector<8x128xf32>
    %37 = arith.subf %20, %36 : vector<8x128xf32>
    %38 = arith.select %35, %33, %37 : vector<8x128xi1>, vector<8x128xf32>
    %c0_14 = arith.constant 0 : index
    %c0_15 = arith.constant 0 : index
    %39 = vector.load %arg4[%c0_14, %c0_15] : memref<8x1xi32, #tpu.memory_space<vmem>>, vector<8x1xi32>
    %c128_i32 = arith.constant 128 : i32
    %40 = arith.muli %arg1, %c128_i32 : i32
    %41 = tpu.iota {dimensions = array<i32: 1>} : vector<8x128xi32>
    %42 = vector.broadcast %40 : i32 to vector<8x128xi32>
    %43 = arith.addi %41, %42 : vector<8x128xi32>
    %44 = vector.broadcast %39 : vector<8x1xi32> to vector<8x128xi32>
    %45 = arith.cmpi eq, %43, %44 : vector<8x128xi32>
    %46 = arith.select %45, %38, %20 : vector<8x128xi1>, vector<8x128xf32>
    %cst_16 = arith.constant 3.000000e+01 : f32
    %47 = vector.broadcast %cst_16 : f32 to vector<8x128xf32>
    %48 = arith.mulf %46, %47 : vector<8x128xf32>
    %c0_17 = arith.constant 0 : index
    %c0_18 = arith.constant 0 : index
    %49 = vector.load %arg5[%c0_17, %c0_18] : memref<8x128xf32, #tpu.memory_space<vmem>>, vector<8x128xf32>
    tpu.vector_store %arg5[%c0_17, %c0_18], %48 {strides = array<i32>} : memref<8x128xf32, #tpu.memory_space<vmem>>, vector<8x128xf32>,
    return
  }
  func.func @transform_0(%arg0: i32, %arg1: i32) -> (i32, i32) {
    %c0_i32 = arith.constant 0 : i32
    %c0_i32_0 = arith.constant 0 : i32
    return %arg0, %c0_i32 : i32, i32
  }
  func.func @transform_1(%arg0: i32, %arg1: i32) -> (i32, i32) {
    %c0_i32 = arith.constant 0 : i32
    %c0_i32_0 = arith.constant 0 : i32
    return %arg1, %c0_i32 : i32, i32
  }
  func.func @transform_2(%arg0: i32, %arg1: i32) -> (i32, i32) {
    %c0_i32 = arith.constant 0 : i32
    %c0_i32_0 = arith.constant 0 : i32
    return %arg0, %c0_i32 : i32, i32
  }
  func.func @transform_3(%arg0: i32, %arg1: i32) -> (i32, i32) {
    %c0_i32 = arith.constant 0 : i32
    return %arg0, %arg1 : i32, i32
  }
}

</mosaic_0001>

<llo_original>
// kernel: tpu_custom_call.1
$region0: #{tpu_custom_call.1}
  #allocation0 [shape = 'u32[]', space=smem, size = 0x4, offset = 0x4, fixed_abs, tag = 'smem constant byte address 0x4 - core index']
  #allocation1 [shape = 'u32[72,128]{1,0:T(1,128)}', space=vmem, size = 0x9000, scoped, tag = 'internal scratch']
  %s0 = inlined_call_operand.vmem [shape: f32[16,128], index: 0, kind: input, shape index: {}]
  %s1 = inlined_call_operand.hbm [shape: f32[256,128], index: 1, kind: input, shape index: {}]
  %s2 = inlined_call_operand.vmem [shape: s32[16,1], index: 2, kind: input, shape index: {}]
  %s3 = inlined_call_operand.hbm [shape: f32[16,256], index: 3, kind: output, shape index: {}]
  %s4 = sld [smem:[#allocation0]]
  $region49: #{tpu_custom_call.1} parent=0
    _
  %s6 = ssub.s32 1, %s4
  %s7 = scalar_select 0, %s6, %s4
  $region1: #{tpu_custom_call.1} parent=0
    #allocation2 [shape = 'u8[131072]{0}', space=vmem, size = 0x20000, scoped, tag = 'input window, operand 1']
    #allocation3 [shape = 's32[2]{0}', space=sflag, size = 0x8, scoped, tag = 'scoped memory for tpu_custom_call.1']
    #allocation4 [shape = 's32[2]{0}', space=sflag, size = 0x8, scoped, tag = 'scoped memory for tpu_custom_call.1']
    #allocation5 [shape = 'u8[8192]{0}', space=vmem, size = 0x2000, scoped, tag = 'output window, operand 0']
    %8 = vsyncpa [#allocation3], 0
    %s9 = scalar_lea.sflag [#allocation3], 1
    %10 = vsyncpa %s9, 0
    %11 = vsyncpa [#allocation4], 0
    %s12 = scalar_lea.sflag [#allocation4], 1
    %13 = vsyncpa %s12, 0
    loop: start=0, step=1, limit=6
    $region2: #{tpu_custom_call.1} parent=1 // loop_pre_header
      _
    $region3: #{tpu_custom_call.1} parent=1 // loop_header
      %s15 = sphi 0, %s19
      %p16 = scmp.ge.s32.totalorder %s15, 6
      %s22 = sphi 0, %s34
      %s23 = sphi 0, %s30
      %s24 = sphi 0, %s22
      %s25 = sphi 0, %s23
      %s26 = sphi 0, %s24
      %s27 = sphi 0, %s25
      %s37 = sphi 0, %s39
      %s40 = sphi 0, %s37
      %s41 = sphi 0, %s40
      %s57 = sphi 0, %s41
      %s63 = sphi 0, %s65
      %s66 = sphi 0, %s63
      %s67 = sphi 0, %s66
      %s83 = sphi 0, %s67
      %s89 = sphi 0, %s91
      %s92 = sphi 0, %s89
      %s93 = sphi 0, %s92
      %s109 = sphi 0, %s93
      %s117 = sphi 0, %s119
      %s120 = sphi 0, %s117
      %s121 = sphi 0, %s120
      %s137 = sphi 0, %s121
    $region4: #{tpu_custom_call.1} parent=1 // loop_header_branch
      %18 = sbr.rel (%p16) target = $region8
    $region5: #{tpu_custom_call.1} parent=1 // loop_body
      %s20 = ssub.s32 %s15, 1
      %s21 = ssub.s32 %s15, 2
      %s28 = sadd.s32 1, %s23
      %p29 = scmp.ge.s32.totalorder %s28, 2
      %s30 = scalar_select %p29, 0, %s28
      %s31 = sadd.s32 1, %s22
      %s32 = scalar_select %p29, %s31, %s22
      %p33 = scmp.ge.s32.totalorder %s32, 2
      %s34 = scalar_select %p33, 0, %s32
      %s35 = ssub.s32 %s22, %s34
      %p36 = scmp.eq.s32.totalorder %s35, 0
      %s38 = sadd.s32 %s37, 1
      %s39 = scalar_select %p36, %s37, %s38
      %p42 = pneg %p36
      %p43 = scmp.eq.s32.totalorder %s15, 3
      %p44 = por %p42, %p43
      %p45 = scmp.ne.s32.totalorder %s37, %s40
      %p46 = scmp.eq.s32.totalorder %s15, 0
      %p47 = por %p45, %p46
      %p48 = scmp.ne.s32.totalorder %s37, %s40
      %p49 = scmp.eq.s32.totalorder %s20, 3
      %p50 = por %p48, %p49
      %p51 = scmp.ne.s32.totalorder %s40, %s41
      %p52 = scmp.eq.s32.totalorder %s20, 0
      %p53 = por %p51, %p52
      %p54 = scmp.ne.s32.totalorder %s40, %s41
      %p55 = scmp.eq.s32.totalorder %s21, 3
      %p56 = por %p54, %p55
      %p58 = scmp.ne.s32.totalorder %s41, %s57
      %p59 = scmp.eq.s32.totalorder %s21, 0
      %p60 = por %p58, %p59
      %s61 = ssub.s32 %s23, %s30
      %p62 = scmp.eq.s32.totalorder %s61, 0
      %s64 = sadd.s32 %s63, 1
      %s65 = scalar_select %p62, %s63, %s64
      %p68 = pneg %p62
      %p69 = scmp.eq.s32.totalorder %s15, 3
      %p70 = por %p68, %p69
      %p71 = scmp.ne.s32.totalorder %s63, %s66
      %p72 = scmp.eq.s32.totalorder %s15, 0
      %p73 = por %p71, %p72
      %p74 = scmp.ne.s32.totalorder %s63, %s66
      %p75 = scmp.eq.s32.totalorder %s20, 3
      %p76 = por %p74, %p75
      %p77 = scmp.ne.s32.totalorder %s66, %s67
      %p78 = scmp.eq.s32.totalorder %s20, 0
      %p79 = por %p77, %p78
      %p80 = scmp.ne.s32.totalorder %s66, %s67
      %p81 = scmp.eq.s32.totalorder %s21, 3
      %p82 = por %p80, %p81
      %p84 = scmp.ne.s32.totalorder %s67, %s83
      %p85 = scmp.eq.s32.totalorder %s21, 0
      %p86 = por %p84, %p85
      %s87 = ssub.s32 %s22, %s34
      %p88 = scmp.eq.s32.totalorder %s87, 0
      %s90 = sadd.s32 %s89, 1
      %s91 = scalar_select %p88, %s89, %s90
      %p94 = pneg %p88
      %p95 = scmp.eq.s32.totalorder %s15, 3
      %p96 = por %p94, %p95
      %p97 = scmp.ne.s32.totalorder %s89, %s92
      %p98 = scmp.eq.s32.totalorder %s15, 0
      %p99 = por %p97, %p98
      %p100 = scmp.ne.s32.totalorder %s89, %s92
      %p101 = scmp.eq.s32.totalorder %s20, 3
      %p102 = por %p100, %p101
      %p103 = scmp.ne.s32.totalorder %s92, %s93
      %p104 = scmp.eq.s32.totalorder %s20, 0
      %p105 = por %p103, %p104
      %p106 = scmp.ne.s32.totalorder %s92, %s93
      %p107 = scmp.eq.s32.totalorder %s21, 3
      %p108 = por %p106, %p107
      %p110 = scmp.ne.s32.totalorder %s93, %s109
      %p111 = scmp.eq.s32.totalorder %s21, 0
      %p112 = por %p110, %p111
      %s113 = ssub.s32 %s22, %s34
      %s114 = ssub.s32 %s23, %s30
      %s115 = sor.u32 %s113, %s114
      %p116 = scmp.eq.s32.totalorder %s115, 0
      %s118 = sadd.s32 %s117, 1
      %s119 = scalar_select %p116, %s117, %s118
      %p122 = pneg %p116
      %p123 = scmp.eq.s32.totalorder %s15, 3
      %p124 = por %p122, %p123
      %p125 = scmp.ne.s32.totalorder %s117, %s120
      %p126 = scmp.eq.s32.totalorder %s15, 0
      %p127 = por %p125, %p126
      %p128 = scmp.ne.s32.totalorder %s117, %s120
      %p129 = scmp.eq.s32.totalorder %s20, 3
      %p130 = por %p128, %p129
      %p131 = scmp.ne.s32.totalorder %s120, %s121
      %p132 = scmp.eq.s32.totalorder %s20, 0
      %p133 = por %p131, %p132
      %p134 = scmp.ne.s32.totalorder %s120, %s121
      %p135 = scmp.eq.s32.totalorder %s21, 3
      %p136 = por %p134, %p135
      %p138 = scmp.ne.s32.totalorder %s121, %s137
      %p139 = scmp.eq.s32.totalorder %s21, 0
      %p140 = por %p138, %p139
      %p141 = scmp.le.s32.totalorder 1, %s15
      %p142 = scmp.lt.s32.totalorder %s15, 5
      %p143 = pnand %p141, %p142
      %p144 = pneg %p143
      // Predicated region
      $region9: #{tpu_custom_call.1} parent=5 // pred_check
        _
      $region10: #{tpu_custom_call.1} parent=5 // pred_check_branch
        %146 = sbr.rel (%p143) target = $region12
      $region11: #{tpu_custom_call.1} parent=5 // pred_region
        %s147 = ssub.s32 %s15, 1
      $region12: #{tpu_custom_call.1} parent=5 // pred_fallthru
        _
      %p148 = scmp.lt.s32.totalorder %s15, 4
      // Predicated region
      $region13: #{tpu_custom_call.1} parent=5 // pred_check
        %p149 = pneg %p148
      $region14: #{tpu_custom_call.1} parent=5 // pred_check_branch
        %151 = sbr.rel (%p149) target = $region16
      $region15: #{tpu_custom_call.1} parent=5 // pred_region
        // Predicated region
        $region17: #{tpu_custom_call.1} parent=15 // pred_check
          %p152 = pneg %p47
        $region18: #{tpu_custom_call.1} parent=15 // pred_check_branch
          %154 = sbr.rel (%p152) target = $region20
        $region19: #{tpu_custom_call.1} parent=15 // pred_region
          %p155 = scmp.lt.s32.totalorder %s22, 1
          %s156 = scalar_select %p155, %s22, 1
          %s157 = smul.addr %s156, 8
          %s158 = scalar_lea.vmem %s0, %s157
        $region20: #{tpu_custom_call.1} parent=15 // pred_fallthru
          _
        // Predicated region
        $region21: #{tpu_custom_call.1} parent=15 // pred_check
          %p159 = pneg %p73
        $region22: #{tpu_custom_call.1} parent=15 // pred_check_branch
          %161 = sbr.rel (%p159) target = $region24
        $region23: #{tpu_custom_call.1} parent=15 // pred_region
          %s162 = sand.u32 %s63, 1
          %s163 = scalar_lea.sflag [#allocation3], %s162
          %s164 = sand.u32 %s63, 1
          %s165 = smul.addr %s164, 128
          %s166 = scalar_lea.vmem [#allocation2], %s165
          %s167 = smul.u32 16, %s23
          %169 = vsyncadd %s163, 0
          %s170 = smul.addr %s167, 8
          %s171 = scalar_lea.hbm %s1, %s170
          %s172 = sshll.u32 %s171, 4
          %s173 = int_to_ptr.hbm [resolvable:$true] %s172
          %s174 = sshll.u32 %s166, 4
          %s175 = int_to_ptr.vmem [resolvable:$true] %s174
          %180 = dma.hbm_to_vmem [thread:$0]  %s173, 2048, %s175, %s163, 128, 128, 8
        $region24: #{tpu_custom_call.1} parent=15 // pred_fallthru
          _
        // Predicated region
        $region25: #{tpu_custom_call.1} parent=15 // pred_check
          %p181 = pneg %p99
        $region26: #{tpu_custom_call.1} parent=15 // pred_check_branch
          %183 = sbr.rel (%p181) target = $region28
        $region27: #{tpu_custom_call.1} parent=15 // pred_region
          %p184 = scmp.lt.s32.totalorder %s22, 1
          %s185 = scalar_select %p184, %s22, 1
          %s186 = smul.addr %s185, 8
          %s187 = scalar_lea.vmem %s2, %s186
        $region28: #{tpu_custom_call.1} parent=15 // pred_fallthru
          _
      $region16: #{tpu_custom_call.1} parent=5 // pred_fallthru
        _
      %p188 = scmp.le.s32.totalorder 1, %s15
      %p189 = scmp.lt.s32.totalorder %s15, 5
      %p190 = pnand %p188, %p189
      %p191 = pneg %p190
      // Predicated region
      $region29: #{tpu_custom_call.1} parent=5 // pred_check
        _
      $region30: #{tpu_custom_call.1} parent=5 // pred_check_branch
        %193 = sbr.rel (%p190) target = $region32
      $region31: #{tpu_custom_call.1} parent=5 // pred_region
        %s194 = ssub.s32 %s15, 1
        %s195 = sand.u32 %s66, 1
        %s196 = scalar_lea.sflag [#allocation3], %s195
        %s197 = sand.u32 %s66, 1
        %s198 = smul.addr %s197, 128
        %s199 = scalar_lea.vmem [#allocation2], %s198
        // Predicated region
        $region33: #{tpu_custom_call.1} parent=31 // pred_check
          %p200 = pneg %p79
        $region34: #{tpu_custom_call.1} parent=31 // pred_check_branch
          %202 = sbr.rel (%p200) target = $region36
        $region35: #{tpu_custom_call.1} parent=31 // pred_region
          %204 = dma.done %s196, 2048
        $region36: #{tpu_custom_call.1} parent=31 // pred_fallthru
          _
        %p205 = scmp.lt.s32.totalorder %s24, 1
        %s206 = scalar_select %p205, %s24, 1
        %s207 = smul.addr %s206, 8
        %s208 = scalar_lea.vmem %s0, %s207
        %p209 = pneg %p53
        %p210 = pneg %p50
        %s211 = sand.u32 %s66, 1
        %s212 = scalar_lea.sflag [#allocation3], %s211
        %s213 = sand.u32 %s66, 1
        %s214 = smul.addr %s213, 128
        %s215 = scalar_lea.vmem [#allocation2], %s214
        %p216 = pneg %p79
        %p217 = pneg %p76
        %p218 = scmp.lt.s32.totalorder %s24, 1
        %s219 = scalar_select %p218, %s24, 1
        %s220 = smul.addr %s219, 8
        %s221 = scalar_lea.vmem %s2, %s220
        %p222 = pneg %p105
        %p223 = pneg %p102
        %p224 = pneg %p133
        %p225 = pneg %p130
        %s226 = sand.u32 %s120, 1
        %s227 = scalar_lea.sflag [#allocation4], %s226
        %s228 = sand.u32 %s120, 1
        %s229 = smul.addr %s228, 8
        %s230 = scalar_lea.vmem [#allocation5], %s229
        %p231 = scmp.lt.s32.totalorder %s24, 1
        %s232 = scalar_select %p231, %s24, 1
        %s233 = smul.addr %s232, 8
        %s234 = scalar_lea.vmem %s0, %s233
        %s235 = smul.u32 16, %s25
        %p236 = scmp.lt.s32.totalorder %s24, 1
        %s237 = scalar_select %p236, %s24, 1
        %s238 = smul.addr %s237, 8
        %s239 = scalar_lea.vmem %s2, %s238
        %v240 = vld [vmem:[%s234] sm:$0xff]
        %v241 = vld [vmem:[%s199] sm:$0xff]
        %v242 = vld [vmem:[%s199 + $0x8] sm:$0xff]
        %v243 = vld [vmem:[%s199 + $0x10] sm:$0xff]
        %v244 = vld [vmem:[%s199 + $0x18] sm:$0xff]
        %v245 = vld [vmem:[%s199 + $0x20] sm:$0xff]
        %v246 = vld [vmem:[%s199 + $0x28] sm:$0xff]
        %v247 = vld [vmem:[%s199 + $0x30] sm:$0xff]
        %v248 = vld [vmem:[%s199 + $0x38] sm:$0xff]
        %v249 = vld [vmem:[%s199 + $0x40] sm:$0xff]
        %v250 = vld [vmem:[%s199 + $0x48] sm:$0xff]
        %v251 = vld [vmem:[%s199 + $0x50] sm:$0xff]
        %v252 = vld [vmem:[%s199 + $0x58] sm:$0xff]
        %v253 = vld [vmem:[%s199 + $0x60] sm:$0xff]
        %v254 = vld [vmem:[%s199 + $0x68] sm:$0xff]
        %v255 = vld [vmem:[%s199 + $0x70] sm:$0xff]
        %v256 = vld [vmem:[%s199 + $0x78] sm:$0xff]
        %v257 = vmul.f32 %v240, %v240
        %258 = vadd.xlane.f32.xlu0 %v257
        %v259 = vpop.xlane.xlu0 %258
        %v260 = vmax.f32 %v259, 1e-24
        %v261 = vrsqrt.pop %v260
        %v262 = vmul.f32 %v261, %v260
        %v263 = vmul.f32 %v262, %v261
        %v264 = vmul.f32 0.5, %v263
        %v265 = vsub.f32 1.5, %v264
        %v266 = vmul.f32 %v261, %v265
        %vm267 = vweird.f32 %v260
        %vm268 = vweird.f32 %v261
        %vm269 = vmor %vm267, %vm268
        %v270 = vsel %vm269, %v261, %v266
        %v271 = vmul.f32 %v240, %v270
        %v272 = vmul.f32 %v241, %v241
        %v273 = vmul.f32 %v242, %v242
        %v274 = vmul.f32 %v243, %v243
        %v275 = vmul.f32 %v244, %v244
        %v276 = vmul.f32 %v245, %v245
        %v277 = vmul.f32 %v246, %v246
        %v278 = vmul.f32 %v247, %v247
        %v279 = vmul.f32 %v248, %v248
        %v280 = vmul.f32 %v249, %v249
        %v281 = vmul.f32 %v250, %v250
        %v282 = vmul.f32 %v251, %v251
        %v283 = vmul.f32 %v252, %v252
        %v284 = vmul.f32 %v253, %v253
        %v285 = vmul.f32 %v254, %v254
        %v286 = vmul.f32 %v255, %v255
        %v287 = vmul.f32 %v256, %v256
        %288 = vadd.xlane.f32.xlu0 %v272
        %v289 = vpop.xlane.xlu0 %288
        %290 = vadd.xlane.f32.xlu0 %v273
        %v291 = vpop.xlane.xlu0 %290
        %292 = vadd.xlane.f32.xlu0 %v274
        %v293 = vpop.xlane.xlu0 %292
        %294 = vadd.xlane.f32.xlu0 %v275
        %v295 = vpop.xlane.xlu0 %294
        %296 = vadd.xlane.f32.xlu0 %v276
        %v297 = vpop.xlane.xlu0 %296
        %298 = vadd.xlane.f32.xlu0 %v277
        %v299 = vpop.xlane.xlu0 %298
        %300 = vadd.xlane.f32.xlu0 %v278
        %v301 = vpop.xlane.xlu0 %300
        %302 = vadd.xlane.f32.xlu0 %v279
        %v303 = vpop.xlane.xlu0 %302
        %304 = vadd.xlane.f32.xlu0 %v280
        %v305 = vpop.xlane.xlu0 %304
        %306 = vadd.xlane.f32.xlu0 %v281
        %v307 = vpop.xlane.xlu0 %306
        %308 = vadd.xlane.f32.xlu0 %v282
        %v309 = vpop.xlane.xlu0 %308
        %310 = vadd.xlane.f32.xlu0 %v283
        %v311 = vpop.xlane.xlu0 %310
        %312 = vadd.xlane.f32.xlu0 %v284
        %v313 = vpop.xlane.xlu0 %312
        %314 = vadd.xlane.f32.xlu0 %v285
        %v315 = vpop.xlane.xlu0 %314
        %316 = vadd.xlane.f32.xlu0 %v286
        %v317 = vpop.xlane.xlu0 %316
        %318 = vadd.xlane.f32.xlu0 %v287
        %v319 = vpop.xlane.xlu0 %318
        %v320 = vmax.f32 %v289, 1e-24
        %v321 = vmax.f32 %v291, 1e-24
        %v322 = vmax.f32 %v293, 1e-24
        %v323 = vmax.f32 %v295, 1e-24
        %v324 = vmax.f32 %v297, 1e-24
        %v325 = vmax.f32 %v299, 1e-24
        %v326 = vmax.f32 %v301, 1e-24
        %v327 = vmax.f32 %v303, 1e-24
        %v328 = vmax.f32 %v305, 1e-24
        %v329 = vmax.f32 %v307, 1e-24
        %v330 = vmax.f32 %v309, 1e-24
        %v331 = vmax.f32 %v311, 1e-24
        %v332 = vmax.f32 %v313, 1e-24
        %v333 = vmax.f32 %v315, 1e-24
        %v334 = vmax.f32 %v317, 1e-24
        %v335 = vmax.f32 %v319, 1e-24
        %v336 = vrsqrt.pop %v320
        %v337 = vmul.f32 %v336, %v320
        %v338 = vmul.f32 %v337, %v336
        %v339 = vmul.f32 0.5, %v338
        %v340 = vsub.f32 1.5, %v339
        %v341 = vmul.f32 %v336, %v340
        %vm342 = vweird.f32 %v320
        %vm343 = vweird.f32 %v336
        %vm344 = vmor %vm342, %vm343
        %v345 = vsel %vm344, %v336, %v341
        %v346 = vrsqrt.pop %v321
        %v347 = vmul.f32 %v346, %v321
        %v348 = vmul.f32 %v347, %v346
        %v349 = vmul.f32 0.5, %v348
        %v350 = vsub.f32 1.5, %v349
        %v351 = vmul.f32 %v346, %v350
        %vm352 = vweird.f32 %v321
        %vm353 = vweird.f32 %v346
        %vm354 = vmor %vm352, %vm353
        %v355 = vsel %vm354, %v346, %v351
        %v356 = vrsqrt.pop %v322
        %v357 = vmul.f32 %v356, %v322
        %v358 = vmul.f32 %v357, %v356
        %v359 = vmul.f32 0.5, %v358
        %v360 = vsub.f32 1.5, %v359
        %v361 = vmul.f32 %v356, %v360
        %vm362 = vweird.f32 %v322
        %vm363 = vweird.f32 %v356
        %vm364 = vmor %vm362, %vm363
        %v365 = vsel %vm364, %v356, %v361
        %v366 = vrsqrt.pop %v323
        %v367 = vmul.f32 %v366, %v323
        %v368 = vmul.f32 %v367, %v366
        %v369 = vmul.f32 0.5, %v368
        %v370 = vsub.f32 1.5, %v369
        %v371 = vmul.f32 %v366, %v370
        %vm372 = vweird.f32 %v323
        %vm373 = vweird.f32 %v366
        %vm374 = vmor %vm372, %vm373
        %v375 = vsel %vm374, %v366, %v371
        %v376 = vrsqrt.pop %v324
        %v377 = vmul.f32 %v376, %v324
        %v378 = vmul.f32 %v377, %v376
        %v379 = vmul.f32 0.5, %v378
        %v380 = vsub.f32 1.5, %v379
        %v381 = vmul.f32 %v376, %v380
        %vm382 = vweird.f32 %v324
        %vm383 = vweird.f32 %v376
        %vm384 = vmor %vm382, %vm383
        %v385 = vsel %vm384, %v376, %v381
        %v386 = vrsqrt.pop %v325
        %v387 = vmul.f32 %v386, %v325
        %v388 = vmul.f32 %v387, %v386
        %v389 = vmul.f32 0.5, %v388
        %v390 = vsub.f32 1.5, %v389
        %v391 = vmul.f32 %v386, %v390
        %vm392 = vweird.f32 %v325
        %vm393 = vweird.f32 %v386
        %vm394 = vmor %vm392, %vm393
        %v395 = vsel %vm394, %v386, %v391
        %v396 = vrsqrt.pop %v326
        %v397 = vmul.f32 %v396, %v326
        %v398 = vmul.f32 %v397, %v396
        %v399 = vmul.f32 0.5, %v398
        %v400 = vsub.f32 1.5, %v399
        %v401 = vmul.f32 %v396, %v400
        %vm402 = vweird.f32 %v326
        %vm403 = vweird.f32 %v396
        %vm404 = vmor %vm402, %vm403
        %v405 = vsel %vm404, %v396, %v401
        %v406 = vrsqrt.pop %v327
        %v407 = vmul.f32 %v406, %v327
        %v408 = vmul.f32 %v407, %v406
        %v409 = vmul.f32 0.5, %v408
        %v410 = vsub.f32 1.5, %v409
        %v411 = vmul.f32 %v406, %v410
        %vm412 = vweird.f32 %v327
        %vm413 = vweird.f32 %v406
        %vm414 = vmor %vm412, %vm413
        %v415 = vsel %vm414, %v406, %v411
        %v416 = vrsqrt.pop %v328
        %v417 = vmul.f32 %v416, %v328
        %v418 = vmul.f32 %v417, %v416
        %v419 = vmul.f32 0.5, %v418
        %v420 = vsub.f32 1.5, %v419
        %v421 = vmul.f32 %v416, %v420
        %vm422 = vweird.f32 %v328
        %vm423 = vweird.f32 %v416
        %vm424 = vmor %vm422, %vm423
        %v425 = vsel %vm424, %v416, %v421
        %v426 = vrsqrt.pop %v329
        %v427 = vmul.f32 %v426, %v329
        %v428 = vmul.f32 %v427, %v426
        %v429 = vmul.f32 0.5, %v428
        %v430 = vsub.f32 1.5, %v429
        %v431 = vmul.f32 %v426, %v430
        %vm432 = vweird.f32 %v329
        %vm433 = vweird.f32 %v426
        %vm434 = vmor %vm432, %vm433
        %v435 = vsel %vm434, %v426, %v431
        %v436 = vrsqrt.pop %v330
        %v437 = vmul.f32 %v436, %v330
        %v438 = vmul.f32 %v437, %v436
        %v439 = vmul.f32 0.5, %v438
        %v440 = vsub.f32 1.5, %v439
        %v441 = vmul.f32 %v436, %v440
        %vm442 = vweird.f32 %v330
        %vm443 = vweird.f32 %v436
        %vm444 = vmor %vm442, %vm443
        %v445 = vsel %vm444, %v436, %v441
        %v446 = vrsqrt.pop %v331
        %v447 = vmul.f32 %v446, %v331
        %v448 = vmul.f32 %v447, %v446
        %v449 = vmul.f32 0.5, %v448
        %v450 = vsub.f32 1.5, %v449
        %v451 = vmul.f32 %v446, %v450
        %vm452 = vweird.f32 %v331
        %vm453 = vweird.f32 %v446
        %vm454 = vmor %vm452, %vm453
        %v455 = vsel %vm454, %v446, %v451
        %v456 = vrsqrt.pop %v332
        %v457 = vmul.f32 %v456, %v332
        %v458 = vmul.f32 %v457, %v456
        %v459 = vmul.f32 0.5, %v458
        %v460 = vsub.f32 1.5, %v459
        %v461 = vmul.f32 %v456, %v460
        %vm462 = vweird.f32 %v332
        %vm463 = vweird.f32 %v456
        %vm464 = vmor %vm462, %vm463
        %v465 = vsel %vm464, %v456, %v461
        %v466 = vrsqrt.pop %v333
        %v467 = vmul.f32 %v466, %v333
        %v468 = vmul.f32 %v467, %v466
        %v469 = vmul.f32 0.5, %v468
        %v470 = vsub.f32 1.5, %v469
        %v471 = vmul.f32 %v466, %v470
        %vm472 = vweird.f32 %v333
        %vm473 = vweird.f32 %v466
        %vm474 = vmor %vm472, %vm473
        %v475 = vsel %vm474, %v466, %v471
        %v476 = vrsqrt.pop %v334
        %v477 = vmul.f32 %v476, %v334
        %v478 = vmul.f32 %v477, %v476
        %v479 = vmul.f32 0.5, %v478
        %v480 = vsub.f32 1.5, %v479
        %v481 = vmul.f32 %v476, %v480
        %vm482 = vweird.f32 %v334
        %vm483 = vweird.f32 %v476
        %vm484 = vmor %vm482, %vm483
        %v485 = vsel %vm484, %v476, %v481
        %v486 = vrsqrt.pop %v335
        %v487 = vmul.f32 %v486, %v335
        %v488 = vmul.f32 %v487, %v486
        %v489 = vmul.f32 0.5, %v488
        %v490 = vsub.f32 1.5, %v489
        %v491 = vmul.f32 %v486, %v490
        %vm492 = vweird.f32 %v335
        %vm493 = vweird.f32 %v486
        %vm494 = vmor %vm492, %vm493
        %v495 = vsel %vm494, %v486, %v491
        %v496 = vmul.f32 %v241, %v345
        %v497 = vmul.f32 %v242, %v355
        %v498 = vmul.f32 %v243, %v365
        %v499 = vmul.f32 %v244, %v375
        %v500 = vmul.f32 %v245, %v385
        %v501 = vmul.f32 %v246, %v395
        %v502 = vmul.f32 %v247, %v405
        %v503 = vmul.f32 %v248, %v415
        %v504 = vmul.f32 %v249, %v425
        %v505 = vmul.f32 %v250, %v435
        %v506 = vmul.f32 %v251, %v445
        %v507 = vmul.f32 %v252, %v455
        %v508 = vmul.f32 %v253, %v465
        %v509 = vmul.f32 %v254, %v475
        %v510 = vmul.f32 %v255, %v485
        %v511 = vmul.f32 %v256, %v495
        %v512 = vpack.c.bf16 %v271, %v271
        %v513 = vpack.c.bf16 %v497, %v496
        %v514 = vpack.c.bf16 %v499, %v498
        %v515 = vpack.c.bf16 %v501, %v500
        %v516 = vpack.c.bf16 %v503, %v502
        %v517 = vpack.c.bf16 %v505, %v504
        %v518 = vpack.c.bf16 %v507, %v506
        %v519 = vpack.c.bf16 %v509, %v508
        %v520 = vpack.c.bf16 %v511, %v510
        %521 = vmatpush.bf16.xpose.msra.mxu0 %v520
        %522 = vmatpush.bf16.xpose.msra.mxu0 %v519
        %523 = vmatpush.bf16.xpose.msra.mxu0 %v518
        %524 = vmatpush.bf16.xpose.msra.mxu0 %v517
        %525 = vmatpush.bf16.xpose.msra.mxu0 %v516
        %526 = vmatpush.bf16.xpose.msra.mxu0 %v515
        %527 = vmatpush.bf16.xpose.msra.mxu0 %v514
        %528 = vmatpush.bf16.xpose.msra.mxu0 %v513
        %529 = vmatmul.bf16.gmra.mxu0 %v512
        %v530 = vpop.f32.mrf.mxu0
        %v531 = vadd.f32 0.0, %v530
        %v532 = vpop.f32.mrf.mxu0
        %533 = vdwg.mxu0
        %v534 = vmul.f32 %v531, %v531
        %v535 = vsub.f32 1.0, %v534
        %v536 = vmax.f32 %v535, 1e-09
        %v537 = vmin.f32 %v536, 1.0
        %v538 = vrsqrt.pop %v537
        %v539 = vmul.f32 %v538, %v537
        %v540 = vmul.f32 %v539, %v538
        %v541 = vmul.f32 0.5, %v540
        %v542 = vsub.f32 1.5, %v541
        %v543 = vmul.f32 %v538, %v542
        %v544 = vmul.f32 %v537, %v543
        %vm545 = vcmp.eq.f32.partialorder %v537, inf
        %v546 = vsel %vm545, %v537, %v544
        %vm547 = vcmp.eq.f32.partialorder %v537, 0.0
        %v548 = vand.u32 %v537, 2147483648
        %v549 = vsel %vm547, %v548, %v546
        %v550 = vmul.f32 %v531, 0.87758255
        %v551 = vmul.f32 %v549, 0.47942555
        %v552 = vsub.f32 %v550, %v551
        %vm553 = vcmp.gt.f32.partialorder %v531, -0.87758255
        %v554 = vsub.f32 %v531, 0.23971277
        %v555 = vsel %vm553, %v552, %v554
        %v556 = vld [vmem:[%s239] sm:$0xff]
        %s557 = smul.u32 %s25, 128
        %v558 = vlaneseq
        %v559 = vand.u32 %v558, 127
        %v560 = vstv %s557
        %v561 = vadd.s32 %v559, %v560
        %562 = vset.pattern.permute.xlu0 0
        %563 = vperm.xlu0 %562, %v556
        %v564 = vpop.permute.xlu0 %563
        %vm565 = vcmp.eq.s32.totalorder %v561, %v564
        %v566 = vsel %vm565, %v555, %v531
        %v567 = vmul.f32 %v566, 30.0
        %568 = vst [vmem:[%s230] sm:$0xff] %v567
        %s569 = sand.u32 %s120, 1
        %s570 = scalar_lea.sflag [#allocation4], %s569
        %s571 = sand.u32 %s120, 1
        %s572 = smul.addr %s571, 8
        %s573 = scalar_lea.vmem [#allocation5], %s572
        // Predicated region
        $region37: #{tpu_custom_call.1} parent=31 // pred_check
          %p574 = pneg %p130
        $region38: #{tpu_custom_call.1} parent=31 // pred_check_branch
          %576 = sbr.rel (%p574) target = $region40
        $region39: #{tpu_custom_call.1} parent=31 // pred_region
          %578 = vsyncadd %s570, 0
          %s579 = smul.addr %s24, 2
          %s580 = sadd.s32 %s25, %s579
          %s581 = smul.addr %s580, 8
          %s582 = scalar_lea.hbm %s3, %s581
          %s584 = sshll.u32 %s573, 4
          %s585 = int_to_ptr.vmem [resolvable:$true] %s584
          %s586 = sshll.u32 %s582, 4
          %s587 = int_to_ptr.hbm [resolvable:$true] %s586
          %589 = dma.vmem_to_hbm [thread:$0]  %s585, 128, %s587, %s570
        $region40: #{tpu_custom_call.1} parent=31 // pred_fallthru
          _
      $region32: #{tpu_custom_call.1} parent=5 // pred_fallthru
        _
      %p590 = scmp.le.s32.totalorder 2, %s15
      // Predicated region
      $region41: #{tpu_custom_call.1} parent=5 // pred_check
        %p591 = pneg %p590
      $region42: #{tpu_custom_call.1} parent=5 // pred_check_branch
        %593 = sbr.rel (%p591) target = $region44
      $region43: #{tpu_custom_call.1} parent=5 // pred_region
        %s594 = ssub.s32 %s15, 2
        // Predicated region
        $region45: #{tpu_custom_call.1} parent=43 // pred_check
          %p595 = pneg %p136
        $region46: #{tpu_custom_call.1} parent=43 // pred_check_branch
          %597 = sbr.rel (%p595) target = $region48
        $region47: #{tpu_custom_call.1} parent=43 // pred_region
          %s598 = sand.u32 %s121, 1
          %s599 = scalar_lea.sflag [#allocation4], %s598
          %s600 = sand.u32 %s121, 1
          %s601 = smul.addr %s600, 8
          %s602 = scalar_lea.vmem [#allocation5], %s601
          %604 = dma.done %s599, 128
        $region48: #{tpu_custom_call.1} parent=43 // pred_fallthru
          _
      $region44: #{tpu_custom_call.1} parent=5 // pred_fallthru
        _
    $region6: #{tpu_custom_call.1} parent=1 // loop_footer
      %s19 = sadd.s32 1, %s15
    $region7: #{tpu_custom_call.1} parent=1 // loop_footer_branch
      %14 = sbr.rel target = $region3
    $region8: #{tpu_custom_call.1} parent=1 // loop_exit
      _
    %605 = vsyncpa [#allocation3], 1
    %s606 = scalar_lea.sflag [#allocation3], 1
    %607 = vsyncpa %s606, 1
    %608 = vsyncpa [#allocation4], 1
    %s609 = scalar_lea.sflag [#allocation4], 1
    %610 = vsyncpa %s609, 1

</llo_original>
